<compile_context>
chip_gen: v7x
topology: tpu7x:2x2x1
jax: 0.10.0
libtpu: 0.0.40
codegen_flags: <defaults>
</compile_context>

<pallas_src>
import functools
import math

import jax
import jax.numpy as jnp
from jax.experimental import pallas as pl
from jax.experimental.pallas import tpu as pltpu


def _round_up(x: int, m: int) -> int:
    return ((x + m - 1) // m) * m


def _vmem_capacity_bytes() -> int:
    """Physical VMEM per TensorCore; conservative fallback if unqueryable."""
    try:
        cap = int(getattr(pltpu.get_tpu_info(), "vmem_capacity_bytes"))
        if cap > 0:
            return cap
    except Exception:
        pass
    return 64 << 20  # conservative (v7x-sized) default


def _mhd_kernel(x_ref, w_ref, o_ref, *, compute_dtype):
    # x_ref: (tile_m, dk) activation tile for this grid step
    # w_ref: (dk, dk) full weight (constant block index -> resident in VMEM)
    # o_ref: (tile_m, dk) output tile
    x = x_ref[...]
    w = w_ref[...]
    if compute_dtype is not None:
        # In-kernel cast: hidden under the MXU/DMA, zero extra HBM traffic,
        # and unlocks the bf16 MXU fast path on v5e/v6e/v7x.
        x = x.astype(compute_dtype)
        w = w.astype(compute_dtype)
    o_ref[...] = jnp.dot(x, w, preferred_element_type=jnp.float32).astype(o_ref.dtype)


def multi_head_dense(x: jax.Array, weight: jax.Array, *,
                     tile_m: int | None = None, compute_dtype=None) -> jax.Array:
    """out[b] = x[b] @ weight for every batch b.  x: (b, wh, d), weight: (d, d)."""
    b, wh, d = x.shape
    assert weight.shape == (d, d)
    out_dtype = x.dtype

    # ---- collapse batch into M ---------------------------------------------
    m = b * wh
    x2 = x.reshape(m, d)

    # ---- lane handling for d (both K and output N) --------------------------
    #   d < 128       : full-dim block, no pad (padding would inflate traffic)
    #   d % 128 == 0  : already lane-dense
    #   otherwise     : zero-pad K/N to the next multiple of 128 (K padding must
    #                   be real zeros; padded output columns sliced off below)
    if d < 128 or d % 128 == 0:
        dk = d
    else:
        dk = _round_up(d, 128)
        x2 = jnp.pad(x2, ((0, 0), (0, dk - d)))
        weight = jnp.pad(weight, ((0, dk - d), (0, dk - d)))

    # ---- generation-aware tile / VMEM budget --------------------------------
    vmem_cap = _vmem_capacity_bytes()
    if tile_m is None:
        tile_m = 1024 if vmem_cap >= (96 << 20) else 512  # v5e/v6e vs v7x

    x_it = x2.dtype.itemsize
    w_it = weight.dtype.itemsize
    o_it = jnp.dtype(out_dtype).itemsize

    ntiles = pl.cdiv(m, tile_m)
    if ntiles < 2 and m >= 512:
        ntiles = 2  # make sure both v7x TensorCores get work when m is moderate
    tile = _round_up(pl.cdiv(m, ntiles), 8)  # rebalanced; last tile not mostly waste

    def vmem_needed(t: int, w_bufs: int) -> int:
        # 2x-buffered x & out tiles + resident weight buffers
        return 2 * t * dk * (x_it + o_it) + w_bufs * dk * dk * w_it

    vmem_budget = int(0.85 * vmem_cap)        # leave headroom for Mosaic scratch
    while tile > 256 and vmem_needed(tile, 2) > vmem_budget:
        tile = _round_up(pl.cdiv(tile, 2), 8)  # shrink activation tiles to fit
    # TODO(synk): add a K/N grid axis ("arbitrary") + f32 accumulator if d ever
    # grows so large that the resident (dk, dk) weight alone exceeds VMEM.

    grid = (pl.cdiv(m, tile),)
    vmem_limit = int(min(max(int(1.5 * vmem_needed(tile, 2)), 32 << 20), vmem_budget))

    # Cost estimate reflects the shapes actually DMA'd/computed (padded tiles).
    m_work = grid[0] * tile
    cost = pl.CostEstimate(
        flops=2 * m_work * dk * dk,
        transcendentals=0,
        bytes_accessed=m_work * dk * (x_it + o_it) + dk * dk * w_it,
    )

    x_spec = pl.BlockSpec((tile, dk), lambda i: (i, 0))
    out_spec = pl.BlockSpec((tile, dk), lambda i: (i, 0))

    def _weight_spec(single_buffer: bool) -> pl.BlockSpec:
        w_idx = lambda i: (0, 0)  # constant block -> DMA'd once, stays resident
        if single_buffer:
            buffered = getattr(pl, "Buffered", None)
            if buffered is not None:
                try:
                    # Double-buffering a constant block is pure VMEM waste
                    # (matters most on v7x's 64 MiB VMEM).
                    return pl.BlockSpec((dk, dk), w_idx, pipeline_mode=buffered(1))
                except Exception:
                    pass
        return pl.BlockSpec((dk, dk), w_idx)

    kernel = functools.partial(_mhd_kernel, compute_dtype=compute_dtype)

    def _build(single_buffer_weight: bool):
        return pl.pallas_call(
            kernel,
            out_shape=jax.ShapeDtypeStruct((m, dk), out_dtype),
            grid_spec=pltpu.PrefetchScalarGridSpec(
                num_scalar_prefetch=0,
                grid=grid,
                in_specs=[x_spec, _weight_spec(single_buffer_weight)],
                out_specs=out_spec,
            ),
            compiler_params=pltpu.CompilerParams(
                dimension_semantics=("parallel",),  # shards M tiles across v7x TCs
                vmem_limit_bytes=vmem_limit,
            ),
            cost_estimate=cost,
        )

    try:
        out_flat = _build(True)(x2, weight)
    except Exception:
        # Fallback if this JAX version rejects the single-buffered weight spec.
        out_flat = _build(False)(x2, weight)

    out = out_flat if dk == d else out_flat[:, :d]
    return out.reshape(b, wh, d)


def init_weight(key: jax.Array, d: int, dtype=jnp.float32) -> jax.Array:
    # Mimic nn.init.kaiming_uniform_(weight, a=sqrt(5)) on a (d, d) tensor:
    # gain = sqrt(2 / (1 + a^2)) = sqrt(1/3); bound = gain * sqrt(3 / fan_in)
    #      = 1 / sqrt(d)
    bound = 1.0 / math.sqrt(d)
    return jax.random.uniform(key, (d, d), dtype=dtype, minval=-bound, maxval=bound)


if __name__ == "__main__":
    key = jax.random.PRNGKey(0)
    k_x, k_w = jax.random.split(key)

    b, wh, d = 2, 8, 32  # batch, spatial tokens (w*h), feature dim
    x = jax.random.normal(k_x, (b, wh, d), dtype=jnp.float32)
    w = init_weight(k_w, d)

    ref = jnp.einsum("bwd,de->bwe", x, w)

    # f32 path: exact check against the plain-JAX reference.
    out = jax.block_until_ready(multi_head_dense(x, w))
    assert out.shape == (b, wh, d)
    assert jnp.allclose(out, ref, atol=1e-5, rtol=1e-5)

    # bf16 MXU fast path (in-kernel cast, f32 accumulation): looser tolerance.
    out_bf16 = jax.block_until_ready(
        multi_head_dense(x, w, compute_dtype=jnp.bfloat16))
    assert out_bf16.shape == (b, wh, d)
    assert jnp.allclose(out_bf16, ref, atol=5e-2, rtol=5e-2)

    print("KERNEL_OK")
</pallas_src>

<mosaic_0001>
module attributes {stable_mosaic.version = 11 : i64} {
  func.func @_mhd_kernel(%arg0: i32, %arg1: memref<16x32xf32, #tpu.memory_space<vmem>>, %arg2: memref<32x32xf32, #tpu.memory_space<vmem>>, %arg3: memref<16x32xf32, #tpu.memory_space<vmem>>) attributes {dimension_semantics = [#tpu.dimension_semantics<parallel>], iteration_bounds = array<i64: 1>, scalar_prefetch = 0 : i64, scratch_operands = 0 : i64, tpu.core_type = #tpu.core_type<tc>, window_params = [{transform_indices = @transform_0, window_bounds = array<i64: 16, 32>}, {pipeline_mode = #tpu.pipeline_mode<synchronous>, transform_indices = @transform_1, window_bounds = array<i64: 32, 32>}, {transform_indices = @transform_2, window_bounds = array<i64: 16, 32>}]} {
    %c0 = arith.constant 0 : index
    %c0_0 = arith.constant 0 : index
    %0 = vector.load %arg1[%c0, %c0_0] : memref<16x32xf32, #tpu.memory_space<vmem>>, vector<16x32xf32>
    %c0_1 = arith.constant 0 : index
    %c0_2 = arith.constant 0 : index
    %1 = vector.load %arg2[%c0_1, %c0_2] : memref<32x32xf32, #tpu.memory_space<vmem>>, vector<32x32xf32>
    %cst = arith.constant dense<0.000000e+00> : vector<16x32xf32>
    %2 = tpu.matmul %0, %1, %cst {dimension_numbers = #tpu.dot_dimension_numbers<[1], [0], [0], [1], [0, 0, 1, 1], [], []>} : vector<16x32xf32>, vector<32x32xf32>, vector<16x32xf32> -> vector<16x32xf32>
    %c0_3 = arith.constant 0 : index
    %c0_4 = arith.constant 0 : index
    %3 = vector.load %arg3[%c0_3, %c0_4] : memref<16x32xf32, #tpu.memory_space<vmem>>, vector<16x32xf32>
    tpu.vector_store %arg3[%c0_3, %c0_4], %2 {strides = array<i32>} : memref<16x32xf32, #tpu.memory_space<vmem>>, vector<16x32xf32>,
    return
  }
  func.func @transform_0(%arg0: i32) -> (i32, i32) {
    %c0_i32 = arith.constant 0 : i32
    %c0_i32_0 = arith.constant 0 : i32
    return %arg0, %c0_i32 : i32, i32
  }
  func.func @transform_1(%arg0: i32) -> (i32, i32) {
    %c0_i32 = arith.constant 0 : i32
    %c0_i32_0 = arith.constant 0 : i32
    %c0_i32_1 = arith.constant 0 : i32
    return %c0_i32, %c0_i32_0 : i32, i32
  }
  func.func @transform_2(%arg0: i32) -> (i32, i32) {
    %c0_i32 = arith.constant 0 : i32
    %c0_i32_0 = arith.constant 0 : i32
    return %arg0, %c0_i32 : i32, i32
  }
}

module attributes {stable_mosaic.version = 11 : i64} {
  func.func @_mhd_kernel(%arg0: i32, %arg1: memref<16x32xf32, #tpu.memory_space<vmem>>, %arg2: memref<32x32xf32, #tpu.memory_space<vmem>>, %arg3: memref<16x32xf32, #tpu.memory_space<vmem>>) attributes {dimension_semantics = [#tpu.dimension_semantics<parallel>], iteration_bounds = array<i64: 1>, scalar_prefetch = 0 : i64, scratch_operands = 0 : i64, tpu.core_type = #tpu.core_type<tc>, window_params = [{transform_indices = @transform_0, window_bounds = array<i64: 16, 32>}, {pipeline_mode = #tpu.pipeline_mode<synchronous>, transform_indices = @transform_1, window_bounds = array<i64: 32, 32>}, {transform_indices = @transform_2, window_bounds = array<i64: 16, 32>}]} {
    %c0 = arith.constant 0 : index
    %c0_0 = arith.constant 0 : index
    %0 = vector.load %arg1[%c0, %c0_0] : memref<16x32xf32, #tpu.memory_space<vmem>>, vector<16x32xf32>
    %c0_1 = arith.constant 0 : index
    %c0_2 = arith.constant 0 : index
    %1 = vector.load %arg2[%c0_1, %c0_2] : memref<32x32xf32, #tpu.memory_space<vmem>>, vector<32x32xf32>
    %cst = arith.constant dense<0.000000e+00> : vector<16x32xf32>
    %2 = tpu.matmul %0, %1, %cst {dimension_numbers = #tpu.dot_dimension_numbers<[1], [0], [0], [1], [0, 0, 1, 1], [], []>} : vector<16x32xf32>, vector<32x32xf32>, vector<16x32xf32> -> vector<16x32xf32>
    %c0_3 = arith.constant 0 : index
    %c0_4 = arith.constant 0 : index
    %3 = vector.load %arg3[%c0_3, %c0_4] : memref<16x32xf32, #tpu.memory_space<vmem>>, vector<16x32xf32>
    tpu.vector_store %arg3[%c0_3, %c0_4], %2 {strides = array<i32>} : memref<16x32xf32, #tpu.memory_space<vmem>>, vector<16x32xf32>,
    return
  }
  func.func @transform_0(%arg0: i32) -> (i32, i32) {
    %c0_i32 = arith.constant 0 : i32
    %c0_i32_0 = arith.constant 0 : i32
    return %arg0, %c0_i32 : i32, i32
  }
  func.func @transform_1(%arg0: i32) -> (i32, i32) {
    %c0_i32 = arith.constant 0 : i32
    %c0_i32_0 = arith.constant 0 : i32
    %c0_i32_1 = arith.constant 0 : i32
    return %c0_i32, %c0_i32_0 : i32, i32
  }
  func.func @transform_2(%arg0: i32) -> (i32, i32) {
    %c0_i32 = arith.constant 0 : i32
    %c0_i32_0 = arith.constant 0 : i32
    return %arg0, %c0_i32 : i32, i32
  }
}

</mosaic_0001>

<llo_original>
// kernel: tpu_custom_call.1
$region0: #{tpu_custom_call.1}
  #allocation0 [shape = 'u32[]', space=smem, size = 0x4, offset = 0x4, fixed_abs, tag = 'smem constant byte address 0x4 - core index']
  #allocation1 [shape = 'u32[144,128]{1,0:T(1,128)}', space=vmem, size = 0x12000, scoped, tag = 'internal scratch']
  %s0 = inlined_call_operand.hbm [shape: f32[16,32], index: 0, kind: input, shape index: {}]
  %s1 = inlined_call_operand.hbm [shape: f32[32,32], index: 1, kind: input, shape index: {}]
  %s2 = inlined_call_operand.hbm [shape: f32[16,32], index: 2, kind: output, shape index: {}]
  %s3 = sld [smem:[#allocation0]]
  $region26: #{tpu_custom_call.1} parent=0
    _
  %s5 = ssub.s32 1, %s3
  %s6 = scalar_select 0, %s5, %s3
  $region1: #{tpu_custom_call.1} parent=0
    #allocation2 [shape = 'u8[8192]{0}', space=vmem, size = 0x2000, scoped, tag = 'input window, operand 0, single buffered']
    #allocation3 [shape = 's32[1]{0}', space=sflag, size = 0x4, scoped, tag = 'scoped memory for tpu_custom_call.1']
    #allocation4 [shape = 's32[1]{0}', space=sflag, size = 0x4, scoped, tag = 'scoped memory for tpu_custom_call.1']
    #allocation5 [shape = 'u8[16384]{0}', space=vmem, size = 0x4000, scoped, tag = 'input window, operand 1, single buffered']
    #allocation6 [shape = 's32[1]{0}', space=sflag, size = 0x4, scoped, tag = 'scoped memory for tpu_custom_call.1']
    #allocation7 [shape = 'u8[8192]{0}', space=vmem, size = 0x2000, scoped, tag = 'output window, operand 0, single buffered']
    %7 = vsyncpa [#allocation3], 0
    %8 = vsyncpa [#allocation6], 0
    %9 = vsyncpa [#allocation4], 0
    // Predicated region
    $region2: #{tpu_custom_call.1} parent=1 // pred_check
      _
    $region3: #{tpu_custom_call.1} parent=1 // pred_check_branch
      %11 = sbr.rel (0) target = $region5
    $region4: #{tpu_custom_call.1} parent=1 // pred_region
      %s13 = ssub.s32 256, 256
      %14 = vsyncadd [#allocation3], %s13
      %s15 = sshll.u32 [#allocation2], 4
      %s16 = int_to_ptr.vmem [resolvable:$true] %s15
      %21 = dma.hbm_to_vmem [thread:$0]  %s0, 256, %s16, [#allocation3], 128, 128, 8
    $region5: #{tpu_custom_call.1} parent=1 // pred_fallthru
      _
    // Predicated region
    $region6: #{tpu_custom_call.1} parent=1 // pred_check
      _
    $region7: #{tpu_custom_call.1} parent=1 // pred_check_branch
      %23 = sbr.rel (0) target = $region9
    $region8: #{tpu_custom_call.1} parent=1 // pred_region
      %s25 = ssub.s32 512, 512
      %26 = vsyncadd [#allocation6], %s25
      %s27 = sshll.u32 [#allocation5], 4
      %s28 = int_to_ptr.vmem [resolvable:$true] %s27
      %33 = dma.hbm_to_vmem [thread:$0]  %s1, 512, %s28, [#allocation6], 128, 128, 8
    $region9: #{tpu_custom_call.1} parent=1 // pred_fallthru
      _
    // Predicated region
    $region10: #{tpu_custom_call.1} parent=1 // pred_check
      _
    $region11: #{tpu_custom_call.1} parent=1 // pred_check_branch
      %35 = sbr.rel (0) target = $region13
    $region12: #{tpu_custom_call.1} parent=1 // pred_region
      %36 = dma.done [#allocation3], 256
    $region13: #{tpu_custom_call.1} parent=1 // pred_fallthru
      _
    // Predicated region
    $region14: #{tpu_custom_call.1} parent=1 // pred_check
      _
    $region15: #{tpu_custom_call.1} parent=1 // pred_check_branch
      %38 = sbr.rel (0) target = $region17
    $region16: #{tpu_custom_call.1} parent=1 // pred_region
      %39 = dma.done [#allocation6], 512
    $region17: #{tpu_custom_call.1} parent=1 // pred_fallthru
      _
    %v40 = vld [vmem:[#allocation2] sm:$0xff]
    %v41 = vld [vmem:[#allocation2 + $0x8] sm:$0xff]
    %v42 = vld [vmem:[#allocation5] sm:$0xff]
    %v43 = vld [vmem:[#allocation5 + $0x8] sm:$0xff]
    %v44 = vld [vmem:[#allocation5 + $0x10] sm:$0xff]
    %v45 = vld [vmem:[#allocation5 + $0x18] sm:$0xff]
    %vm46 = vcmask 261120
    %v48 = vsel %vm46, %v40, 0
    %v51 = vsel %vm46, %v41, 0
    %53 = vmatprep.subr.mxu0 0.0
    %54 = vmatpush1.msra.mxu0 %v42
    %55 = vmatprep.subr.mxu0 0.0
    %56 = vmatpush1.msra.mxu0 %v43
    %57 = vmatprep.subr.mxu0 0.0
    %58 = vmatpush1.msra.mxu0 %v44
    %59 = vmatprep.subr.mxu0 0.0
    %60 = vmatpush1.msra.mxu0 %v45
    %61 = vmatprep.subr.mxu0 0.0
    %62 = vmatpush1.msra.mxu0 0.0
    %63 = vmatprep.subr.mxu0 0.0
    %64 = vmatpush1.msra.mxu0 0.0
    %65 = vmatprep.subr.mxu0 0.0
    %66 = vmatpush1.msra.mxu0 0.0
    %67 = vmatprep.subr.mxu0 0.0
    %68 = vmatpush1.msra.mxu0 0.0
    %69 = vmatprep.subr.mxu0 0.0
    %70 = vmatpush1.msra.mxu0 0.0
    %71 = vmatprep.subr.mxu0 0.0
    %72 = vmatpush1.msra.mxu0 0.0
    %73 = vmatprep.subr.mxu0 0.0
    %74 = vmatpush1.msra.mxu0 0.0
    %75 = vmatprep.subr.mxu0 0.0
    %76 = vmatpush1.msra.mxu0 0.0
    %77 = vmatprep.subr.mxu0 0.0
    %78 = vmatpush1.msra.mxu0 0.0
    %79 = vmatprep.subr.mxu0 0.0
    %80 = vmatpush1.msra.mxu0 0.0
    %81 = vmatprep.subr.mxu0 0.0
    %82 = vmatpush1.msra.mxu0 0.0
    %83 = vmatprep.subr.mxu0 0.0
    %84 = vmatpush1.msra.mxu0 0.0
    %85 = vmatprep.subr.mxu0 0.0
    %86 = vmatpush1.msra.mxu0 0.0
    %87 = vmatprep.subr.mxu0 0.0
    %88 = vmatpush1.msra.mxu0 0.0
    %89 = vmatprep.subr.mxu0 0.0
    %90 = vmatpush1.msra.mxu0 0.0
    %91 = vmatprep.subr.mxu0 0.0
    %92 = vmatpush1.msra.mxu0 0.0
    %93 = vmatprep.subr.mxu0 0.0
    %94 = vmatpush1.msra.mxu0 0.0
    %95 = vmatprep.subr.mxu0 0.0
    %96 = vmatpush1.msra.mxu0 0.0
    %97 = vmatprep.subr.mxu0 0.0
    %98 = vmatpush1.msra.mxu0 0.0
    %99 = vmatprep.subr.mxu0 0.0
    %100 = vmatpush1.msra.mxu0 0.0
    %101 = vmatprep.subr.mxu0 0.0
    %102 = vmatpush1.msra.mxu0 0.0
    %103 = vmatprep.subr.mxu0 0.0
    %104 = vmatpush1.msra.mxu0 0.0
    %105 = vmatprep.subr.mxu0 0.0
    %106 = vmatpush1.msra.mxu0 0.0
    %107 = vmatprep.subr.mxu0 0.0
    %108 = vmatpush1.msra.mxu0 0.0
    %109 = vmatprep.subr.mxu0 0.0
    %110 = vmatpush1.msra.mxu0 0.0
    %111 = vmatprep.subr.mxu0 0.0
    %112 = vmatpush1.msra.mxu0 0.0
    %113 = vmatprep.subr.mxu0 0.0
    %114 = vmatpush1.msra.mxu0 0.0
    %115 = vmatprep.subr.mxu0 0.0
    %116 = vmatpush1.msra.mxu0 0.0
    %117 = vmatprep.mubr.f32.mxu0 0.0
    %118 = vmatmul.mubr.f32.gmra.mrb[0].mxu0 %v48
    %v119 = vpop.f32.mrb[0].mxu0
    %v120 = vadd.f32 0.0, %v119
    %v121 = vpop.f32.mrb[0].mxu0
    %122 = vmatprep.mubr.f32.mxu0 0.0
    %123 = vmatmul.mubr.f32.gmra.mrb[0].mxu0 %v51
    %v124 = vpop.f32.mrb[0].mxu0
    %v125 = vadd.f32 0.0, %v124
    %v126 = vpop.f32.mrb[0].mxu0
    %127 = vdwg.mxu0
    %128 = vst.msk [vmem:[#allocation7] sm:$0xff] %vm46, %v120
    %129 = vst.msk [vmem:[#allocation7 + $0x8] sm:$0xff] %vm46, %v125
    // Predicated region
    $region18: #{tpu_custom_call.1} parent=1 // pred_check
      _
    $region19: #{tpu_custom_call.1} parent=1 // pred_check_branch
      %131 = sbr.rel (0) target = $region21
    $region20: #{tpu_custom_call.1} parent=1 // pred_region
      %s133 = ssub.s32 256, 256
      %134 = vsyncadd [#allocation4], %s133
      %s135 = sshll.u32 [#allocation7], 4
      %s136 = int_to_ptr.vmem [resolvable:$true] %s135
      %141 = dma.vmem_to_hbm [thread:$0]  %s136, 256, %s2, [#allocation4], 128, 128, 8
    $region21: #{tpu_custom_call.1} parent=1 // pred_fallthru
      _
    // Predicated region
    $region22: #{tpu_custom_call.1} parent=1 // pred_check
      _
    $region23: #{tpu_custom_call.1} parent=1 // pred_check_branch
      %143 = sbr.rel (0) target = $region25
    $region24: #{tpu_custom_call.1} parent=1 // pred_region
      %144 = dma.done [#allocation4], 256
    $region25: #{tpu_custom_call.1} parent=1 // pred_fallthru
      _
    %145 = vsyncpa [#allocation3], 1
    %146 = vsyncpa [#allocation6], 1
    %147 = vsyncpa [#allocation4], 1

// kernel: tpu_custom_call.1
$region0: #{tpu_custom_call.1}
  #allocation0 [shape = 'u32[]', space=smem, size = 0x4, offset = 0x4, fixed_abs, tag = 'smem constant byte address 0x4 - core index']
  #allocation1 [shape = 'u32[144,128]{1,0:T(1,128)}', space=vmem, size = 0x12000, scoped, tag = 'internal scratch']
  %s0 = inlined_call_operand.hbm [shape: f32[16,32], index: 0, kind: input, shape index: {}]
  %s1 = inlined_call_operand.hbm [shape: f32[32,32], index: 1, kind: input, shape index: {}]
  %s2 = inlined_call_operand.hbm [shape: f32[16,32], index: 2, kind: output, shape index: {}]
  %s3 = sld [smem:[#allocation0]]
  $region26: #{tpu_custom_call.1} parent=0
    _
  %s5 = ssub.s32 1, %s3
  %s6 = scalar_select 0, %s5, %s3
  $region1: #{tpu_custom_call.1} parent=0
    #allocation2 [shape = 'u8[8192]{0}', space=vmem, size = 0x2000, scoped, tag = 'input window, operand 0, single buffered']
    #allocation3 [shape = 's32[1]{0}', space=sflag, size = 0x4, scoped, tag = 'scoped memory for tpu_custom_call.1']
    #allocation4 [shape = 's32[1]{0}', space=sflag, size = 0x4, scoped, tag = 'scoped memory for tpu_custom_call.1']
    #allocation5 [shape = 'u8[16384]{0}', space=vmem, size = 0x4000, scoped, tag = 'input window, operand 1, single buffered']
    #allocation6 [shape = 's32[1]{0}', space=sflag, size = 0x4, scoped, tag = 'scoped memory for tpu_custom_call.1']
    #allocation7 [shape = 'u8[8192]{0}', space=vmem, size = 0x2000, scoped, tag = 'output window, operand 0, single buffered']
    %7 = vsyncpa [#allocation3], 0
    %8 = vsyncpa [#allocation6], 0
    %9 = vsyncpa [#allocation4], 0
    // Predicated region
    $region2: #{tpu_custom_call.1} parent=1 // pred_check
      _
    $region3: #{tpu_custom_call.1} parent=1 // pred_check_branch
      %11 = sbr.rel (0) target = $region5
    $region4: #{tpu_custom_call.1} parent=1 // pred_region
      %s13 = ssub.s32 256, 256
      %14 = vsyncadd [#allocation3], %s13
      %s15 = sshll.u32 [#allocation2], 4
      %s16 = int_to_ptr.vmem [resolvable:$true] %s15
      %21 = dma.hbm_to_vmem [thread:$0]  %s0, 256, %s16, [#allocation3], 128, 128, 8
    $region5: #{tpu_custom_call.1} parent=1 // pred_fallthru
      _
    // Predicated region
    $region6: #{tpu_custom_call.1} parent=1 // pred_check
      _
    $region7: #{tpu_custom_call.1} parent=1 // pred_check_branch
      %23 = sbr.rel (0) target = $region9
    $region8: #{tpu_custom_call.1} parent=1 // pred_region
      %s25 = ssub.s32 512, 512
      %26 = vsyncadd [#allocation6], %s25
      %s27 = sshll.u32 [#allocation5], 4
      %s28 = int_to_ptr.vmem [resolvable:$true] %s27
      %33 = dma.hbm_to_vmem [thread:$0]  %s1, 512, %s28, [#allocation6], 128, 128, 8
    $region9: #{tpu_custom_call.1} parent=1 // pred_fallthru
      _
    // Predicated region
    $region10: #{tpu_custom_call.1} parent=1 // pred_check
      _
    $region11: #{tpu_custom_call.1} parent=1 // pred_check_branch
      %35 = sbr.rel (0) target = $region13
    $region12: #{tpu_custom_call.1} parent=1 // pred_region
      %36 = dma.done [#allocation3], 256
    $region13: #{tpu_custom_call.1} parent=1 // pred_fallthru
      _
    // Predicated region
    $region14: #{tpu_custom_call.1} parent=1 // pred_check
      _
    $region15: #{tpu_custom_call.1} parent=1 // pred_check_branch
      %38 = sbr.rel (0) target = $region17
    $region16: #{tpu_custom_call.1} parent=1 // pred_region
      %39 = dma.done [#allocation6], 512
    $region17: #{tpu_custom_call.1} parent=1 // pred_fallthru
      _
    %v40 = vld [vmem:[#allocation2] sm:$0xff]
    %v41 = vld [vmem:[#allocation2 + $0x8] sm:$0xff]
    %v42 = vld [vmem:[#allocation5] sm:$0xff]
    %v43 = vld [vmem:[#allocation5 + $0x8] sm:$0xff]
    %v44 = vld [vmem:[#allocation5 + $0x10] sm:$0xff]
    %v45 = vld [vmem:[#allocation5 + $0x18] sm:$0xff]
    %vm46 = vcmask 261120
    %v48 = vsel %vm46, %v40, 0
    %v51 = vsel %vm46, %v41, 0
    %53 = vmatprep.subr.mxu0 0.0
    %54 = vmatpush1.msra.mxu0 %v42
    %55 = vmatprep.subr.mxu0 0.0
    %56 = vmatpush1.msra.mxu0 %v43
    %57 = vmatprep.subr.mxu0 0.0
    %58 = vmatpush1.msra.mxu0 %v44
    %59 = vmatprep.subr.mxu0 0.0
    %60 = vmatpush1.msra.mxu0 %v45
    %61 = vmatprep.subr.mxu0 0.0
    %62 = vmatpush1.msra.mxu0 0.0
    %63 = vmatprep.subr.mxu0 0.0
    %64 = vmatpush1.msra.mxu0 0.0
    %65 = vmatprep.subr.mxu0 0.0
    %66 = vmatpush1.msra.mxu0 0.0
    %67 = vmatprep.subr.mxu0 0.0
    %68 = vmatpush1.msra.mxu0 0.0
    %69 = vmatprep.subr.mxu0 0.0
    %70 = vmatpush1.msra.mxu0 0.0
    %71 = vmatprep.subr.mxu0 0.0
    %72 = vmatpush1.msra.mxu0 0.0
    %73 = vmatprep.subr.mxu0 0.0
    %74 = vmatpush1.msra.mxu0 0.0
    %75 = vmatprep.subr.mxu0 0.0
    %76 = vmatpush1.msra.mxu0 0.0
    %77 = vmatprep.subr.mxu0 0.0
    %78 = vmatpush1.msra.mxu0 0.0
    %79 = vmatprep.subr.mxu0 0.0
    %80 = vmatpush1.msra.mxu0 0.0
    %81 = vmatprep.subr.mxu0 0.0
    %82 = vmatpush1.msra.mxu0 0.0
    %83 = vmatprep.subr.mxu0 0.0
    %84 = vmatpush1.msra.mxu0 0.0
    %85 = vmatprep.subr.mxu0 0.0
    %86 = vmatpush1.msra.mxu0 0.0
    %87 = vmatprep.subr.mxu0 0.0
    %88 = vmatpush1.msra.mxu0 0.0
    %89 = vmatprep.subr.mxu0 0.0
    %90 = vmatpush1.msra.mxu0 0.0
    %91 = vmatprep.subr.mxu0 0.0
    %92 = vmatpush1.msra.mxu0 0.0
    %93 = vmatprep.subr.mxu0 0.0
    %94 = vmatpush1.msra.mxu0 0.0
    %95 = vmatprep.subr.mxu0 0.0
    %96 = vmatpush1.msra.mxu0 0.0
    %97 = vmatprep.subr.mxu0 0.0
    %98 = vmatpush1.msra.mxu0 0.0
    %99 = vmatprep.subr.mxu0 0.0
    %100 = vmatpush1.msra.mxu0 0.0
    %101 = vmatprep.subr.mxu0 0.0
    %102 = vmatpush1.msra.mxu0 0.0
    %103 = vmatprep.subr.mxu0 0.0
    %104 = vmatpush1.msra.mxu0 0.0
    %105 = vmatprep.subr.mxu0 0.0
    %106 = vmatpush1.msra.mxu0 0.0
    %107 = vmatprep.subr.mxu0 0.0
    %108 = vmatpush1.msra.mxu0 0.0
    %109 = vmatprep.subr.mxu0 0.0
    %110 = vmatpush1.msra.mxu0 0.0
    %111 = vmatprep.subr.mxu0 0.0
    %112 = vmatpush1.msra.mxu0 0.0
    %113 = vmatprep.subr.mxu0 0.0
    %114 = vmatpush1.msra.mxu0 0.0
    %115 = vmatprep.subr.mxu0 0.0
    %116 = vmatpush1.msra.mxu0 0.0
    %117 = vmatprep.mubr.f32.mxu0 0.0
    %118 = vmatmul.mubr.f32.gmra.mrb[0].mxu0 %v48
    %v119 = vpop.f32.mrb[0].mxu0
    %v120 = vadd.f32 0.0, %v119
    %v121 = vpop.f32.mrb[0].mxu0
    %122 = vmatprep.mubr.f32.mxu0 0.0
    %123 = vmatmul.mubr.f32.gmra.mrb[0].mxu0 %v51
    %v124 = vpop.f32.mrb[0].mxu0
    %v125 = vadd.f32 0.0, %v124
    %v126 = vpop.f32.mrb[0].mxu0
    %127 = vdwg.mxu0
    %128 = vst.msk [vmem:[#allocation7] sm:$0xff] %vm46, %v120
    %129 = vst.msk [vmem:[#allocation7 + $0x8] sm:$0xff] %vm46, %v125
    // Predicated region
    $region18: #{tpu_custom_call.1} parent=1 // pred_check
      _
    $region19: #{tpu_custom_call.1} parent=1 // pred_check_branch
      %131 = sbr.rel (0) target = $region21
    $region20: #{tpu_custom_call.1} parent=1 // pred_region
      %s133 = ssub.s32 256, 256
      %134 = vsyncadd [#allocation4], %s133
      %s135 = sshll.u32 [#allocation7], 4
      %s136 = int_to_ptr.vmem [resolvable:$true] %s135
      %141 = dma.vmem_to_hbm [thread:$0]  %s136, 256, %s2, [#allocation4], 128, 128, 8
    $region21: #{tpu_custom_call.1} parent=1 // pred_fallthru
      _
    // Predicated region
    $region22: #{tpu_custom_call.1} parent=1 // pred_check
      _
    $region23: #{tpu_custom_call.1} parent=1 // pred_check_branch
      %143 = sbr.rel (0) target = $region25
    $region24: #{tpu_custom_call.1} parent=1 // pred_region
      %144 = dma.done [#allocation4], 256
    $region25: #{tpu_custom_call.1} parent=1 // pred_fallthru
      _
    %145 = vsyncpa [#allocation3], 1
    %146 = vsyncpa [#allocation6], 1
    %147 = vsyncpa [#allocation4], 1

</llo_original>
